<compile_context>
chip_gen: v7x
topology: tpu7x:2x2x1
jax: 0.10.0
libtpu: 0.0.40
codegen_flags: <defaults>
</compile_context>

<pallas_src>
import functools

import jax
import jax.numpy as jnp
from jax.experimental import pallas as pl
from jax.experimental.pallas import tpu as pltpu

IN_FEATURES = 28 * 28       # 784
HIDDEN = 128
OUT_FEATURES = 10
OUT_PAD = 128               # lane-dense padded output width
TM_MAX = 1024               # max batch-tile rows per grid step
TARGET_STEPS = 4            # aim for >=4 grid steps so v7x's 2 TCs both work


def _round_up(x: int, m: int) -> int:
    return ((x + m - 1) // m) * m


def mlp_kernel(x_ref, w1t_ref, w2t_ref, o_ref):
    # x_ref  : (tm, 784)  f32  (one batch tile per grid step)
    # w1t_ref: (784, 128) bf16 (VMEM-resident across grid steps)
    # w2t_ref: (128, 128) bf16 (zero-padded cols 10..127, resident)
    # o_ref  : (tm, 128)  bf16
    x = x_ref[...].astype(jnp.bfloat16)                      # cast in-kernel
    h = jnp.dot(x, w1t_ref[...], preferred_element_type=jnp.float32)
    h = jnp.maximum(h, 0.0)                                   # ReLU on f32 acc
    out = jnp.dot(h.astype(jnp.bfloat16), w2t_ref[...],
                  preferred_element_type=jnp.float32)
    o_ref[...] = out.astype(o_ref.dtype)                      # bf16 store


def prepare_params(w1, w2):
    """One-time weight prep (do NOT call per forward step).

    w1: (128, 784) PyTorch fc1.weight ; w2: (10, 128) PyTorch fc2.weight.
    Returns bf16 (784, 128) and zero-padded bf16 (128, 128).
    """
    w1t = jnp.asarray(w1, jnp.float32).T.astype(jnp.bfloat16)          # (784, 128)
    w2t = jnp.asarray(w2, jnp.float32).T.astype(jnp.bfloat16)          # (128, 10)
    w2t_pad = jnp.zeros((HIDDEN, OUT_PAD), jnp.bfloat16).at[:, :OUT_FEATURES].set(w2t)
    return w1t, w2t_pad


@functools.partial(jax.jit, static_argnames=())
def simple_linear_forward(x_nchw, w1t, w2t_pad):
    """x_nchw: (B, 1, 28, 28) f32. w1t/w2t_pad from prepare_params()."""
    B = x_nchw.shape[0]
    x_flat = x_nchw.reshape(B, IN_FEATURES)        # Flatten(1): metadata-only

    # Batch tiling: aim for >=TARGET_STEPS grid steps (megacore on v7x) while
    # capping the tile at TM_MAX rows; tm is a multiple of 16 (bf16 sublanes).
    tm = min(TM_MAX, _round_up(pl.cdiv(B, TARGET_STEPS), 16))
    grid = (pl.cdiv(B, tm),)                       # partial boundary block OK

    cost = pl.CostEstimate(
        flops=2 * B * IN_FEATURES * HIDDEN + 2 * B * HIDDEN * OUT_PAD,
        transcendentals=0,
        bytes_accessed=(x_flat.size * 4            # f32 x read
                        + w1t.size * 2 + w2t_pad.size * 2
                        + B * OUT_PAD * 2),        # bf16 output write
    )

    out_padded = pl.pallas_call(
        mlp_kernel,
        out_shape=jax.ShapeDtypeStruct((B, OUT_PAD), jnp.bfloat16),
        grid=grid,
        in_specs=[
            # x: one (tm, 784) f32 tile per grid step (double-buffered).
            pl.BlockSpec((tm, IN_FEATURES), lambda i: (i, 0)),
            # Weights: same block every step -> stay VMEM-resident.
            pl.BlockSpec((IN_FEATURES, HIDDEN), lambda i: (0, 0)),
            pl.BlockSpec((HIDDEN, OUT_PAD), lambda i: (0, 0)),
        ],
        out_specs=pl.BlockSpec((tm, OUT_PAD), lambda i: (i, 0)),
        compiler_params=pltpu.CompilerParams(
            dimension_semantics=("parallel",),     # megacore sharding on v7x
        ),
        cost_estimate=cost,
    )(x_flat, w1t, w2t_pad)

    # Tiny (B, 10) slice + f32 cast; logits are bf16-accurate.
    return out_padded[:, :OUT_FEATURES].astype(jnp.float32)


if __name__ == "__main__":
    key = jax.random.PRNGKey(0)
    k_x, k_w1, k_w2 = jax.random.split(key, 3)

    B = 2
    x = jax.random.normal(k_x, (B, 1, 28, 28), dtype=jnp.float32)
    # Kaiming-uniform-ish scale like PyTorch defaults (1/sqrt(fan_in)).
    w1 = jax.random.uniform(k_w1, (HIDDEN, IN_FEATURES), dtype=jnp.float32,
                            minval=-1.0, maxval=1.0) / jnp.sqrt(float(IN_FEATURES))
    w2 = jax.random.uniform(k_w2, (OUT_FEATURES, HIDDEN), dtype=jnp.float32,
                            minval=-1.0, maxval=1.0) / jnp.sqrt(float(HIDDEN))

    w1t, w2t_pad = prepare_params(w1, w2)          # one-time, outside hot path

    out = simple_linear_forward(x, w1t, w2t_pad)
    out = jax.block_until_ready(out)

    # f32 reference (same math); bf16 compute path => loose tolerance.
    ref = jnp.maximum(x.reshape(B, -1) @ w1.T, 0.0) @ w2.T
    assert out.shape == (B, OUT_FEATURES)
    assert jnp.allclose(out, ref, atol=2e-2, rtol=2e-2), (
        f"max abs err {jnp.max(jnp.abs(out - ref))}")

    print("KERNEL_OK")
</pallas_src>

<mosaic_0001>
module attributes {stable_mosaic.version = 11 : i64} {
  func.func @mlp_kernel(%arg0: i32, %arg1: memref<16x784xf32, #tpu.memory_space<vmem>>, %arg2: memref<784x128xbf16, #tpu.memory_space<vmem>>, %arg3: memref<128x128xbf16, #tpu.memory_space<vmem>>, %arg4: memref<16x128xbf16, #tpu.memory_space<vmem>>) attributes {dimension_semantics = [#tpu.dimension_semantics<parallel>], iteration_bounds = array<i64: 1>, scalar_prefetch = 0 : i64, scratch_operands = 0 : i64, tpu.core_type = #tpu.core_type<tc>, window_params = [{transform_indices = @transform_0, window_bounds = array<i64: 16, 784>}, {pipeline_mode = #tpu.pipeline_mode<synchronous>, transform_indices = @transform_1, window_bounds = array<i64: 784, 128>}, {pipeline_mode = #tpu.pipeline_mode<synchronous>, transform_indices = @transform_2, window_bounds = array<i64: 128, 128>}, {transform_indices = @transform_3, window_bounds = array<i64: 16, 128>}]} {
    %c0 = arith.constant 0 : index
    %c0_0 = arith.constant 0 : index
    %0 = vector.load %arg1[%c0, %c0_0] : memref<16x784xf32, #tpu.memory_space<vmem>>, vector<16x784xf32>
    %1 = arith.truncf %0 : vector<16x784xf32> to vector<16x784xbf16>
    %c0_1 = arith.constant 0 : index
    %c0_2 = arith.constant 0 : index
    %2 = vector.load %arg2[%c0_1, %c0_2] : memref<784x128xbf16, #tpu.memory_space<vmem>>, vector<784x128xbf16>
    %cst = arith.constant dense<0.000000e+00> : vector<16x128xf32>
    %3 = tpu.matmul %1, %2, %cst {dimension_numbers = #tpu.dot_dimension_numbers<[1], [0], [0], [1], [0, 0, 1, 1], [], []>} : vector<16x784xbf16>, vector<784x128xbf16>, vector<16x128xf32> -> vector<16x128xf32>
    %cst_3 = arith.constant 0.000000e+00 : f32
    %4 = vector.broadcast %cst_3 : f32 to vector<16x128xf32>
    %5 = arith.maximumf %3, %4 : vector<16x128xf32>
    %6 = arith.truncf %5 : vector<16x128xf32> to vector<16x128xbf16>
    %c0_4 = arith.constant 0 : index
    %c0_5 = arith.constant 0 : index
    %7 = vector.load %arg3[%c0_4, %c0_5] : memref<128x128xbf16, #tpu.memory_space<vmem>>, vector<128x128xbf16>
    %cst_6 = arith.constant dense<0.000000e+00> : vector<16x128xf32>
    %8 = tpu.matmul %6, %7, %cst_6 {dimension_numbers = #tpu.dot_dimension_numbers<[1], [0], [0], [1], [0, 0, 1, 1], [], []>} : vector<16x128xbf16>, vector<128x128xbf16>, vector<16x128xf32> -> vector<16x128xf32>
    %9 = arith.truncf %8 : vector<16x128xf32> to vector<16x128xbf16>
    %c0_7 = arith.constant 0 : index
    %c0_8 = arith.constant 0 : index
    %10 = vector.load %arg4[%c0_7, %c0_8] : memref<16x128xbf16, #tpu.memory_space<vmem>>, vector<16x128xbf16>
    tpu.vector_store %arg4[%c0_7, %c0_8], %9 {strides = array<i32>} : memref<16x128xbf16, #tpu.memory_space<vmem>>, vector<16x128xbf16>,
    return
  }
  func.func @transform_0(%arg0: i32) -> (i32, i32) {
    %c0_i32 = arith.constant 0 : i32
    %c0_i32_0 = arith.constant 0 : i32
    return %arg0, %c0_i32 : i32, i32
  }
  func.func @transform_1(%arg0: i32) -> (i32, i32) {
    %c0_i32 = arith.constant 0 : i32
    %c0_i32_0 = arith.constant 0 : i32
    %c0_i32_1 = arith.constant 0 : i32
    return %c0_i32, %c0_i32_0 : i32, i32
  }
  func.func @transform_2(%arg0: i32) -> (i32, i32) {
    %c0_i32 = arith.constant 0 : i32
    %c0_i32_0 = arith.constant 0 : i32
    %c0_i32_1 = arith.constant 0 : i32
    return %c0_i32, %c0_i32_0 : i32, i32
  }
  func.func @transform_3(%arg0: i32) -> (i32, i32) {
    %c0_i32 = arith.constant 0 : i32
    %c0_i32_0 = arith.constant 0 : i32
    return %arg0, %c0_i32 : i32, i32
  }
}

</mosaic_0001>

<llo_original>
// kernel: simple_linear_forward.1
$region0: #{simple_linear_forward.1}
  #allocation0 [shape = 'u32[]', space=smem, size = 0x4, offset = 0x4, fixed_abs, tag = 'smem constant byte address 0x4 - core index']
  #allocation1 [shape = 'u32[144,128]{1,0:T(1,128)}', space=vmem, size = 0x12000, scoped, tag = 'internal scratch']
  %s0 = inlined_call_operand.vmem [shape: f32[2,784], index: 0, kind: input, shape index: {}]
  %s1 = inlined_call_operand.hbm [shape: bf16[784,128], index: 1, kind: input, shape index: {}]
  %s2 = inlined_call_operand.vmem [shape: bf16[128,128], index: 2, kind: input, shape index: {}]
  %s3 = inlined_call_operand.vmem [shape: bf16[2,128], index: 3, kind: output, shape index: {}]
  %s4 = sld [smem:[#allocation0]]
  $region56: #{simple_linear_forward.1} parent=0
    _
  %s6 = ssub.s32 1, %s4
  %s7 = scalar_select 0, %s6, %s4
  $region1: #{simple_linear_forward.1} parent=0
    #allocation2 [shape = 'u8[200704]{0}', space=vmem, size = 0x31000, scoped, tag = 'input window, operand 1, single buffered']
    #allocation3 [shape = 's32[1]{0}', space=sflag, size = 0x4, scoped, tag = 'scoped memory for simple_linear_forward.1']
    #allocation4 [shape = 'u8[4096]{0}', space=vmem, size = 0x1000, scoped, tag = 'output window, operand 0, single buffered']
    %8 = vsyncpa [#allocation3], 0
    // Predicated region
    $region2: #{simple_linear_forward.1} parent=1 // pred_check
      _
    $region3: #{simple_linear_forward.1} parent=1 // pred_check_branch
      %10 = sbr.rel (0) target = $region5
    $region4: #{simple_linear_forward.1} parent=1 // pred_region
      _
    $region5: #{simple_linear_forward.1} parent=1 // pred_fallthru
      _
    // Predicated region
    $region6: #{simple_linear_forward.1} parent=1 // pred_check
      _
    $region7: #{simple_linear_forward.1} parent=1 // pred_check_branch
      %12 = sbr.rel (0) target = $region9
    $region8: #{simple_linear_forward.1} parent=1 // pred_region
      %s14 = ssub.s32 6272, 6272
      %15 = vsyncadd [#allocation3], %s14
      %s16 = sshll.u32 [#allocation2], 4
      %s17 = int_to_ptr.vmem [resolvable:$true] %s16
      %22 = dma.hbm_to_vmem [thread:$0]  %s1, 6272, %s17, [#allocation3], 64, 64, 4
    $region9: #{simple_linear_forward.1} parent=1 // pred_fallthru
      _
    // Predicated region
    $region10: #{simple_linear_forward.1} parent=1 // pred_check
      _
    $region11: #{simple_linear_forward.1} parent=1 // pred_check_branch
      %24 = sbr.rel (0) target = $region13
    $region12: #{simple_linear_forward.1} parent=1 // pred_region
      _
    $region13: #{simple_linear_forward.1} parent=1 // pred_fallthru
      _
    // Predicated region
    $region14: #{simple_linear_forward.1} parent=1 // pred_check
      _
    $region15: #{simple_linear_forward.1} parent=1 // pred_check_branch
      %26 = sbr.rel (0) target = $region17
    $region16: #{simple_linear_forward.1} parent=1 // pred_region
      %27 = dma.done [#allocation3], 6272
    $region17: #{simple_linear_forward.1} parent=1 // pred_fallthru
      _
    %v29 = vld [vmem:[%s0] sm:$0xff]
    %v30 = vld [vmem:[%s0 + $0x8] sm:$0x3f]
    %v31 = vld [vmem:[%s0 + $0xe] sm:$0xff]
    %v32 = vld [vmem:[%s0 + $0x16] sm:$0x3f]
    %v33 = vld [vmem:[%s0 + $0x1c] sm:$0xff]
    %v34 = vld [vmem:[%s0 + $0x24] sm:$0x3f]
    %v35 = vld [vmem:[%s0 + $0x2a] sm:$0xff]
    %v36 = vld [vmem:[%s0 + $0x32] sm:$0x3f]
    %v37 = vld [vmem:[%s0 + $0x38] sm:$0xff]
    %v38 = vld [vmem:[%s0 + $0x40] sm:$0x3f]
    %v39 = vld [vmem:[%s0 + $0x46] sm:$0xff]
    %v40 = vld [vmem:[%s0 + $0x4e] sm:$0x3f]
    %v41 = vld [vmem:[%s0 + $0x54] sm:$0xff]
    %v42 = vld [vmem:[%s0 + $0x5c] sm:$0x3f]
    %v43 = vld [vmem:[%s0 + $0x62] sm:$0xff]
    %v44 = vld [vmem:[%s0 + $0x6a] sm:$0x3f]
    %v61 = vcombine.low %v29, %v31
    %v62 = vcombine.high %v29, %v31
    %v63 = vcombine.low %v33, %v35
    %v64 = vcombine.high %v33, %v35
    %v66 = vunpack.c.l.s4 1983009808
    %v67 = vunpack.c.0.s8 %v66
    %v68 = vlaneseq
    %v69 = vshrl.u32 %v68, 7
    %v70 = vsub.s32 %v67, %v69
    %v71 = vrot.slane %v61, %v70
    %v73 = vunpack.c.l.s4 1983009808
    %v74 = vunpack.c.0.s8 %v73
    %v75 = vlaneseq
    %v76 = vshrl.u32 %v75, 7
    %v77 = vsub.s32 %v74, %v76
    %v78 = vrot.slane %v62, %v77
    %v80 = vunpack.c.l.s4 1983009808
    %v81 = vunpack.c.0.s8 %v80
    %v82 = vlaneseq
    %v83 = vshrl.u32 %v82, 7
    %v84 = vsub.s32 %v81, %v83
    %v85 = vrot.slane %v63, %v84
    %v87 = vunpack.c.l.s4 1983009808
    %v88 = vunpack.c.0.s8 %v87
    %v89 = vlaneseq
    %v90 = vshrl.u32 %v89, 7
    %v91 = vsub.s32 %v88, %v90
    %v92 = vrot.slane %v64, %v91
    %v93 = vcombine.low %v71, %v85
    %v94 = vcombine.high %v71, %v85
    %v95 = vcombine.low %v78, %v92
    %v96 = vcombine.high %v78, %v92
    %v97 = vcombine.low %v30, %v32
    %v98 = vcombine.high %v30, %v32
    %v99 = vcombine.low %v34, %v36
    %v100 = vcombine.high %v34, %v36
    %v102 = vunpack.c.l.s4 1983009808
    %v103 = vunpack.c.0.s8 %v102
    %v104 = vlaneseq
    %v105 = vshrl.u32 %v104, 7
    %v106 = vsub.s32 %v103, %v105
    %v107 = vrot.slane %v97, %v106
    %v109 = vunpack.c.l.s4 1983009808
    %v110 = vunpack.c.0.s8 %v109
    %v111 = vlaneseq
    %v112 = vshrl.u32 %v111, 7
    %v113 = vsub.s32 %v110, %v112
    %v114 = vrot.slane %v98, %v113
    %v116 = vunpack.c.l.s4 1983009808
    %v117 = vunpack.c.0.s8 %v116
    %v118 = vlaneseq
    %v119 = vshrl.u32 %v118, 7
    %v120 = vsub.s32 %v117, %v119
    %v121 = vrot.slane %v99, %v120
    %v123 = vunpack.c.l.s4 1983009808
    %v124 = vunpack.c.0.s8 %v123
    %v125 = vlaneseq
    %v126 = vshrl.u32 %v125, 7
    %v127 = vsub.s32 %v124, %v126
    %v128 = vrot.slane %v100, %v127
    %v129 = vcombine.low %v107, %v121
    %v130 = vcombine.high %v107, %v121
    %v131 = vcombine.low %v114, %v128
    %v132 = vcombine.low %v37, %v39
    %v133 = vcombine.high %v37, %v39
    %v134 = vcombine.low %v41, %v43
    %v135 = vcombine.high %v41, %v43
    %v137 = vunpack.c.l.s4 1983009808
    %v138 = vunpack.c.0.s8 %v137
    %v139 = vlaneseq
    %v140 = vshrl.u32 %v139, 7
    %v141 = vsub.s32 %v138, %v140
    %v142 = vrot.slane %v132, %v141
    %v144 = vunpack.c.l.s4 1983009808
    %v145 = vunpack.c.0.s8 %v144
    %v146 = vlaneseq
    %v147 = vshrl.u32 %v146, 7
    %v148 = vsub.s32 %v145, %v147
    %v149 = vrot.slane %v133, %v148
    %v151 = vunpack.c.l.s4 1983009808
    %v152 = vunpack.c.0.s8 %v151
    %v153 = vlaneseq
    %v154 = vshrl.u32 %v153, 7
    %v155 = vsub.s32 %v152, %v154
    %v156 = vrot.slane %v134, %v155
    %v158 = vunpack.c.l.s4 1983009808
    %v159 = vunpack.c.0.s8 %v158
    %v160 = vlaneseq
    %v161 = vshrl.u32 %v160, 7
    %v162 = vsub.s32 %v159, %v161
    %v163 = vrot.slane %v135, %v162
    %v164 = vcombine.low %v142, %v156
    %v165 = vcombine.high %v142, %v156
    %v166 = vcombine.low %v149, %v163
    %v167 = vcombine.high %v149, %v163
    %v168 = vcombine.low %v38, %v40
    %v169 = vcombine.high %v38, %v40
    %v170 = vcombine.low %v42, %v44
    %v171 = vcombine.high %v42, %v44
    %v173 = vunpack.c.l.s4 1983009808
    %v174 = vunpack.c.0.s8 %v173
    %v175 = vlaneseq
    %v176 = vshrl.u32 %v175, 7
    %v177 = vsub.s32 %v174, %v176
    %v178 = vrot.slane %v168, %v177
    %v180 = vunpack.c.l.s4 1983009808
    %v181 = vunpack.c.0.s8 %v180
    %v182 = vlaneseq
    %v183 = vshrl.u32 %v182, 7
    %v184 = vsub.s32 %v181, %v183
    %v185 = vrot.slane %v169, %v184
    %v187 = vunpack.c.l.s4 1983009808
    %v188 = vunpack.c.0.s8 %v187
    %v189 = vlaneseq
    %v190 = vshrl.u32 %v189, 7
    %v191 = vsub.s32 %v188, %v190
    %v192 = vrot.slane %v170, %v191
    %v194 = vunpack.c.l.s4 1983009808
    %v195 = vunpack.c.0.s8 %v194
    %v196 = vlaneseq
    %v197 = vshrl.u32 %v196, 7
    %v198 = vsub.s32 %v195, %v197
    %v199 = vrot.slane %v171, %v198
    %v200 = vcombine.low %v178, %v192
    %v201 = vcombine.high %v178, %v192
    %v202 = vcombine.low %v185, %v199
    %v217 = vpack.c.bf16 %v164, %v93
    %v218 = vpack.c.bf16 %v165, %v94
    %v219 = vpack.c.bf16 %v166, %v95
    %v220 = vpack.c.bf16 %v167, %v96
    %v221 = vpack.c.bf16 %v200, %v129
    %v222 = vpack.c.bf16 %v201, %v130
    %v223 = vpack.c.bf16 %v202, %v131
    %v224 = vld [vmem:[#allocation2] sm:$0xf]
    %v225 = vld [vmem:[#allocation2 + $0x4] sm:$0xf]
    %v226 = vld [vmem:[#allocation2 + $0x8] sm:$0xf]
    %v227 = vld [vmem:[#allocation2 + $0xc] sm:$0xf]
    %v228 = vld [vmem:[#allocation2 + $0x10] sm:$0xf]
    %v229 = vld [vmem:[#allocation2 + $0x14] sm:$0xf]
    %v230 = vld [vmem:[#allocation2 + $0x18] sm:$0xf]
    %v231 = vld [vmem:[#allocation2 + $0x1c] sm:$0xf]
    %v232 = vld [vmem:[#allocation2 + $0x20] sm:$0xf]
    %v233 = vld [vmem:[#allocation2 + $0x24] sm:$0xf]
    %v234 = vld [vmem:[#allocation2 + $0x28] sm:$0xf]
    %v235 = vld [vmem:[#allocation2 + $0x2c] sm:$0xf]
    %v236 = vld [vmem:[#allocation2 + $0x30] sm:$0xf]
    %v237 = vld [vmem:[#allocation2 + $0x34] sm:$0xf]
    %v238 = vld [vmem:[#allocation2 + $0x38] sm:$0xf]
    %v239 = vld [vmem:[#allocation2 + $0x3c] sm:$0xf]
    %v240 = vld [vmem:[#allocation2 + $0x40] sm:$0xf]
    %v241 = vld [vmem:[#allocation2 + $0x44] sm:$0xf]
    %v242 = vld [vmem:[#allocation2 + $0x48] sm:$0xf]
    %v243 = vld [vmem:[#allocation2 + $0x4c] sm:$0xf]
    %v244 = vld [vmem:[#allocation2 + $0x50] sm:$0xf]
    %v245 = vld [vmem:[#allocation2 + $0x54] sm:$0xf]
    %v246 = vld [vmem:[#allocation2 + $0x58] sm:$0xf]
    %v247 = vld [vmem:[#allocation2 + $0x5c] sm:$0xf]
    %v248 = vld [vmem:[#allocation2 + $0x60] sm:$0xf]
    %v249 = vld [vmem:[#allocation2 + $0x64] sm:$0xf]
    %v250 = vld [vmem:[#allocation2 + $0x68] sm:$0xf]
    %v251 = vld [vmem:[#allocation2 + $0x6c] sm:$0xf]
    %v252 = vld [vmem:[#allocation2 + $0x70] sm:$0xf]
    %v253 = vld [vmem:[#allocation2 + $0x74] sm:$0xf]
    %v254 = vld [vmem:[#allocation2 + $0x78] sm:$0xf]
    %v255 = vld [vmem:[#allocation2 + $0x7c] sm:$0xf]
    %v256 = vld [vmem:[#allocation2 + $0x80] sm:$0xf]
    %v257 = vld [vmem:[#allocation2 + $0x84] sm:$0xf]
    %v258 = vld [vmem:[#allocation2 + $0x88] sm:$0xf]
    %v259 = vld [vmem:[#allocation2 + $0x8c] sm:$0xf]
    %v260 = vld [vmem:[#allocation2 + $0x90] sm:$0xf]
    %v261 = vld [vmem:[#allocation2 + $0x94] sm:$0xf]
    %v262 = vld [vmem:[#allocation2 + $0x98] sm:$0xf]
    %v263 = vld [vmem:[#allocation2 + $0x9c] sm:$0xf]
    %v264 = vld [vmem:[#allocation2 + $0xa0] sm:$0xf]
    %v265 = vld [vmem:[#allocation2 + $0xa4] sm:$0xf]
    %v266 = vld [vmem:[#allocation2 + $0xa8] sm:$0xf]
    %v267 = vld [vmem:[#allocation2 + $0xac] sm:$0xf]
    %v268 = vld [vmem:[#allocation2 + $0xb0] sm:$0xf]
    %v269 = vld [vmem:[#allocation2 + $0xb4] sm:$0xf]
    %v270 = vld [vmem:[#allocation2 + $0xb8] sm:$0xf]
    %v271 = vld [vmem:[#allocation2 + $0xbc] sm:$0xf]
    %v272 = vld [vmem:[#allocation2 + $0xc0] sm:$0xf]
    %v273 = vld [vmem:[#allocation2 + $0xc4] sm:$0xf]
    %v274 = vld [vmem:[#allocation2 + $0xc8] sm:$0xf]
    %v275 = vld [vmem:[#allocation2 + $0xcc] sm:$0xf]
    %v276 = vld [vmem:[#allocation2 + $0xd0] sm:$0xf]
    %v277 = vld [vmem:[#allocation2 + $0xd4] sm:$0xf]
    %v278 = vld [vmem:[#allocation2 + $0xd8] sm:$0xf]
    %v279 = vld [vmem:[#allocation2 + $0xdc] sm:$0xf]
    %v280 = vld [vmem:[#allocation2 + $0xe0] sm:$0xf]
    %v281 = vld [vmem:[#allocation2 + $0xe4] sm:$0xf]
    %v282 = vld [vmem:[#allocation2 + $0xe8] sm:$0xf]
    %v283 = vld [vmem:[#allocation2 + $0xec] sm:$0xf]
    %v284 = vld [vmem:[#allocation2 + $0xf0] sm:$0xf]
    %v285 = vld [vmem:[#allocation2 + $0xf4] sm:$0xf]
    %v286 = vld [vmem:[#allocation2 + $0xf8] sm:$0xf]
    %v287 = vld [vmem:[#allocation2 + $0xfc] sm:$0xf]
    %v288 = vld [vmem:[#allocation2 + $0x100] sm:$0xf]
    %v289 = vld [vmem:[#allocation2 + $0x104] sm:$0xf]
    %v290 = vld [vmem:[#allocation2 + $0x108] sm:$0xf]
    %v291 = vld [vmem:[#allocation2 + $0x10c] sm:$0xf]
    %v292 = vld [vmem:[#allocation2 + $0x110] sm:$0xf]
    %v293 = vld [vmem:[#allocation2 + $0x114] sm:$0xf]
    %v294 = vld [vmem:[#allocation2 + $0x118] sm:$0xf]
    %v295 = vld [vmem:[#allocation2 + $0x11c] sm:$0xf]
    %v296 = vld [vmem:[#allocation2 + $0x120] sm:$0xf]
    %v297 = vld [vmem:[#allocation2 + $0x124] sm:$0xf]
    %v298 = vld [vmem:[#allocation2 + $0x128] sm:$0xf]
    %v299 = vld [vmem:[#allocation2 + $0x12c] sm:$0xf]
    %v300 = vld [vmem:[#allocation2 + $0x130] sm:$0xf]
    %v301 = vld [vmem:[#allocation2 + $0x134] sm:$0xf]
    %v302 = vld [vmem:[#allocation2 + $0x138] sm:$0xf]
    %v303 = vld [vmem:[#allocation2 + $0x13c] sm:$0xf]
    %v304 = vld [vmem:[#allocation2 + $0x140] sm:$0xf]
    %v305 = vld [vmem:[#allocation2 + $0x144] sm:$0xf]
    %v306 = vld [vmem:[#allocation2 + $0x148] sm:$0xf]
    %v307 = vld [vmem:[#allocation2 + $0x14c] sm:$0xf]
    %v308 = vld [vmem:[#allocation2 + $0x150] sm:$0xf]
    %v309 = vld [vmem:[#allocation2 + $0x154] sm:$0xf]
    %v310 = vld [vmem:[#allocation2 + $0x158] sm:$0xf]
    %v311 = vld [vmem:[#allocation2 + $0x15c] sm:$0xf]
    %v312 = vld [vmem:[#allocation2 + $0x160] sm:$0xf]
    %v313 = vld [vmem:[#allocation2 + $0x164] sm:$0xf]
    %v314 = vld [vmem:[#allocation2 + $0x168] sm:$0xf]
    %v315 = vld [vmem:[#allocation2 + $0x16c] sm:$0xf]
    %v316 = vld [vmem:[#allocation2 + $0x170] sm:$0xf]
    %v317 = vld [vmem:[#allocation2 + $0x174] sm:$0xf]
    %v318 = vld [vmem:[#allocation2 + $0x178] sm:$0xf]
    %v319 = vld [vmem:[#allocation2 + $0x17c] sm:$0xf]
    %v320 = vld [vmem:[#allocation2 + $0x180] sm:$0xf]
    %v321 = vld [vmem:[#allocation2 + $0x184] sm:$0xf]
    %v420 = vunpack.c.l.b16 %v224
    %v421 = vunpack.c.l.b16 %v225
    %v422 = vunpack.c.l.b16 %v226
    %v423 = vunpack.c.l.b16 %v227
    %v424 = vunpack.c.l.b16 %v228
    %v425 = vunpack.c.l.b16 %v229
    %v426 = vunpack.c.l.b16 %v230
    %v427 = vunpack.c.l.b16 %v231
    %v428 = vunpack.c.l.b16 %v232
    %v429 = vunpack.c.l.b16 %v233
    %v430 = vunpack.c.l.b16 %v234
    %v431 = vunpack.c.l.b16 %v235
    %v432 = vunpack.c.l.b16 %v236
    %v433 = vunpack.c.l.b16 %v237
    %v434 = vunpack.c.l.b16 %v238
    %v435 = vunpack.c.l.b16 %v239
    %v436 = vunpack.c.l.b16 %v240
    %v437 = vunpack.c.l.b16 %v241
    %v438 = vunpack.c.l.b16 %v242
    %v439 = vunpack.c.l.b16 %v243
    %v440 = vunpack.c.l.b16 %v244
    %v441 = vunpack.c.l.b16 %v245
    %v442 = vunpack.c.l.b16 %v246
    %v443 = vunpack.c.l.b16 %v247
    %v444 = vunpack.c.l.b16 %v248
    %v445 = vunpack.c.l.b16 %v249
    %v446 = vunpack.c.l.b16 %v250
    %v447 = vunpack.c.l.b16 %v251
    %v448 = vunpack.c.l.b16 %v252
    %v449 = vunpack.c.l.b16 %v253
    %v450 = vunpack.c.l.b16 %v254
    %v451 = vunpack.c.l.b16 %v255
    %v452 = vunpack.c.l.b16 %v256
    %v453 = vunpack.c.l.b16 %v257
    %v454 = vunpack.c.l.b16 %v258
    %v455 = vunpack.c.l.b16 %v259
    %v456 = vunpack.c.l.b16 %v260
    %v457 = vunpack.c.l.b16 %v261
    %v458 = vunpack.c.l.b16 %v262
    %v459 = vunpack.c.l.b16 %v263
    %v460 = vunpack.c.l.b16 %v264
    %v461 = vunpack.c.l.b16 %v265
    %v462 = vunpack.c.l.b16 %v266
    %v463 = vunpack.c.l.b16 %v267
    %v464 = vunpack.c.l.b16 %v268
    %v465 = vunpack.c.l.b16 %v269
    %v466 = vunpack.c.l.b16 %v270
    %v467 = vunpack.c.l.b16 %v271
    %v468 = vunpack.c.l.b16 %v272
    %v469 = vunpack.c.l.b16 %v273
    %v470 = vunpack.c.l.b16 %v274
    %v471 = vunpack.c.l.b16 %v275
    %v472 = vunpack.c.l.b16 %v276
    %v473 = vunpack.c.l.b16 %v277
    %v474 = vunpack.c.l.b16 %v278
    %v475 = vunpack.c.l.b16 %v279
    %v476 = vunpack.c.l.b16 %v280
    %v477 = vunpack.c.l.b16 %v281
    %v478 = vunpack.c.l.b16 %v282
    %v479 = vunpack.c.l.b16 %v283
    %v480 = vunpack.c.l.b16 %v284
    %v481 = vunpack.c.l.b16 %v285
    %v482 = vunpack.c.l.b16 %v286
    %v483 = vunpack.c.l.b16 %v287
    %v484 = vunpack.c.l.b16 %v288
    %v485 = vunpack.c.l.b16 %v289
    %v486 = vunpack.c.l.b16 %v290
    %v487 = vunpack.c.l.b16 %v291
    %v488 = vunpack.c.l.b16 %v292
    %v489 = vunpack.c.l.b16 %v293
    %v490 = vunpack.c.l.b16 %v294
    %v491 = vunpack.c.l.b16 %v295
    %v492 = vunpack.c.l.b16 %v296
    %v493 = vunpack.c.l.b16 %v297
    %v494 = vunpack.c.l.b16 %v298
    %v495 = vunpack.c.l.b16 %v299
    %v496 = vunpack.c.l.b16 %v300
    %v497 = vunpack.c.l.b16 %v301
    %v498 = vunpack.c.l.b16 %v302
    %v499 = vunpack.c.l.b16 %v303
    %v500 = vunpack.c.l.b16 %v304
    %v501 = vunpack.c.l.b16 %v305
    %v502 = vunpack.c.l.b16 %v306
    %v503 = vunpack.c.l.b16 %v307
    %v504 = vunpack.c.l.b16 %v308
    %v505 = vunpack.c.l.b16 %v309
    %v506 = vunpack.c.l.b16 %v310
    %v507 = vunpack.c.l.b16 %v311
    %v508 = vunpack.c.l.b16 %v312
    %v509 = vunpack.c.l.b16 %v313
    %v510 = vunpack.c.l.b16 %v314
    %v511 = vunpack.c.l.b16 %v315
    %v512 = vunpack.c.l.b16 %v316
    %v513 = vunpack.c.l.b16 %v317
    %v514 = vunpack.c.l.b16 %v318
    %v515 = vunpack.c.l.b16 %v319
    %v516 = vunpack.c.l.b16 %v320
    %v517 = vunpack.c.l.b16 %v321
    %v518 = vpack.c.b16 %v421, %v420
    %v519 = vpack.c.b16 %v423, %v422
    %v520 = vpack.c.b16 %v425, %v424
    %v521 = vpack.c.b16 %v427, %v426
    %v522 = vpack.c.b16 %v429, %v428
    %v523 = vpack.c.b16 %v431, %v430
    %v524 = vpack.c.b16 %v433, %v432
    %v525 = vpack.c.b16 %v435, %v434
    %v526 = vpack.c.b16 %v437, %v436
    %v527 = vpack.c.b16 %v439, %v438
    %v528 = vpack.c.b16 %v441, %v440
    %v529 = vpack.c.b16 %v443, %v442
    %v530 = vpack.c.b16 %v445, %v444
    %v531 = vpack.c.b16 %v447, %v446
    %v532 = vpack.c.b16 %v449, %v448
    %v533 = vpack.c.b16 %v451, %v450
    %v534 = vpack.c.b16 %v453, %v452
    %v535 = vpack.c.b16 %v455, %v454
    %v536 = vpack.c.b16 %v457, %v456
    %v537 = vpack.c.b16 %v459, %v458
    %v538 = vpack.c.b16 %v461, %v460
    %v539 = vpack.c.b16 %v463, %v462
    %v540 = vpack.c.b16 %v465, %v464
    %v541 = vpack.c.b16 %v467, %v466
    %v542 = vpack.c.b16 %v469, %v468
    %v543 = vpack.c.b16 %v471, %v470
    %v544 = vpack.c.b16 %v473, %v472
    %v545 = vpack.c.b16 %v475, %v474
    %v546 = vpack.c.b16 %v477, %v476
    %v547 = vpack.c.b16 %v479, %v478
    %v548 = vpack.c.b16 %v481, %v480
    %v549 = vpack.c.b16 %v483, %v482
    %v550 = vpack.c.b16 %v485, %v484
    %v551 = vpack.c.b16 %v487, %v486
    %v552 = vpack.c.b16 %v489, %v488
    %v553 = vpack.c.b16 %v491, %v490
    %v554 = vpack.c.b16 %v493, %v492
    %v555 = vpack.c.b16 %v495, %v494
    %v556 = vpack.c.b16 %v497, %v496
    %v557 = vpack.c.b16 %v499, %v498
    %v558 = vpack.c.b16 %v501, %v500
    %v559 = vpack.c.b16 %v503, %v502
    %v560 = vpack.c.b16 %v505, %v504
    %v561 = vpack.c.b16 %v507, %v506
    %v562 = vpack.c.b16 %v509, %v508
    %v563 = vpack.c.b16 %v511, %v510
    %v564 = vpack.c.b16 %v513, %v512
    %v565 = vpack.c.b16 %v515, %v514
    %v566 = vpack.c.b16 %v517, %v516
    %vm616 = vcmask 130048
    %v618 = vsel %vm616, %v223, 0
    %620 = vmatprep.subr.bf16.mxu0 0
    %621 = vmatpush1.bf16.msra.mxu0 %v518
    %622 = vmatprep.subr.bf16.mxu0 0
    %623 = vmatpush1.bf16.msra.mxu0 %v519
    %624 = vmatprep.subr.bf16.mxu0 0
    %625 = vmatpush1.bf16.msra.mxu0 %v520
    %626 = vmatprep.subr.bf16.mxu0 0
    %627 = vmatpush1.bf16.msra.mxu0 %v521
    %628 = vmatprep.subr.bf16.mxu0 0
    %629 = vmatpush1.bf16.msra.mxu0 %v522
    %630 = vmatprep.subr.bf16.mxu0 0
    %631 = vmatpush1.bf16.msra.mxu0 %v523
    %632 = vmatprep.subr.bf16.mxu0 0
    %633 = vmatpush1.bf16.msra.mxu0 %v524
    %634 = vmatprep.subr.bf16.mxu0 0
    %635 = vmatpush1.bf16.msra.mxu0 %v525
    %636 = vmatprep.subr.bf16.mxu0 0
    %637 = vmatpush1.bf16.msra.mxu0 %v526
    %638 = vmatprep.subr.bf16.mxu0 0
    %639 = vmatpush1.bf16.msra.mxu0 %v527
    %640 = vmatprep.subr.bf16.mxu0 0
    %641 = vmatpush1.bf16.msra.mxu0 %v528
    %642 = vmatprep.subr.bf16.mxu0 0
    %643 = vmatpush1.bf16.msra.mxu0 %v529
    %644 = vmatprep.subr.bf16.mxu0 0
    %645 = vmatpush1.bf16.msra.mxu0 %v530
    %646 = vmatprep.subr.bf16.mxu0 0
    %647 = vmatpush1.bf16.msra.mxu0 %v531
    %648 = vmatprep.subr.bf16.mxu0 0
    %649 = vmatpush1.bf16.msra.mxu0 %v532
    %650 = vmatprep.subr.bf16.mxu0 0
    %651 = vmatpush1.bf16.msra.mxu0 %v533
    %652 = vmatprep.mubr.bf16.mxu0 %v218
    %653 = vmatmul.mubr.bf16.gmra.mrb[0].mxu0 %v217
    %v654 = vpop.f32.mrb[0].mxu0
    %v655 = vadd.f32 0.0, %v654
    %v656 = vpop.f32.mrb[0].mxu0
    %v657 = vpop.f32.mrb[0].mxu0
    %v658 = vadd.f32 0.0, %v657
    %v659 = vpop.f32.mrb[0].mxu0
    %660 = vdwg.mxu0
    %661 = vmatprep.subr.bf16.mxu0 0
    %662 = vmatpush1.bf16.msra.mxu0 %v534
    %663 = vmatprep.subr.bf16.mxu0 0
    %664 = vmatpush1.bf16.msra.mxu0 %v535
    %665 = vmatprep.subr.bf16.mxu0 0
    %666 = vmatpush1.bf16.msra.mxu0 %v536
    %667 = vmatprep.subr.bf16.mxu0 0
    %668 = vmatpush1.bf16.msra.mxu0 %v537
    %669 = vmatprep.subr.bf16.mxu0 0
    %670 = vmatpush1.bf16.msra.mxu0 %v538
    %671 = vmatprep.subr.bf16.mxu0 0
    %672 = vmatpush1.bf16.msra.mxu0 %v539
    %673 = vmatprep.subr.bf16.mxu0 0
    %674 = vmatpush1.bf16.msra.mxu0 %v540
    %675 = vmatprep.subr.bf16.mxu0 0
    %676 = vmatpush1.bf16.msra.mxu0 %v541
    %677 = vmatprep.subr.bf16.mxu0 0
    %678 = vmatpush1.bf16.msra.mxu0 %v542
    %679 = vmatprep.subr.bf16.mxu0 0
    %680 = vmatpush1.bf16.msra.mxu0 %v543
    %681 = vmatprep.subr.bf16.mxu0 0
    %682 = vmatpush1.bf16.msra.mxu0 %v544
    %683 = vmatprep.subr.bf16.mxu0 0
    %684 = vmatpush1.bf16.msra.mxu0 %v545
    %685 = vmatprep.subr.bf16.mxu0 0
    %686 = vmatpush1.bf16.msra.mxu0 %v546
    %687 = vmatprep.subr.bf16.mxu0 0
    %688 = vmatpush1.bf16.msra.mxu0 %v547
    %689 = vmatprep.subr.bf16.mxu0 0
    %690 = vmatpush1.bf16.msra.mxu0 %v548
    %691 = vmatprep.subr.bf16.mxu0 0
    %692 = vmatpush1.bf16.msra.mxu0 %v549
    %693 = vmatprep.mubr.bf16.mxu0 %v220
    %694 = vmatmul.mubr.bf16.gmra.mrb[0].mxu0 %v219
    %v695 = vpop.f32.mrb[0].mxu0
    %v696 = vadd.f32 %v655, %v695
    %v697 = vpop.f32.mrb[0].mxu0
    %v698 = vpop.f32.mrb[0].mxu0
    %v699 = vadd.f32 %v658, %v698
    %v700 = vpop.f32.mrb[0].mxu0
    %701 = vdwg.mxu0
    %702 = vmatprep.subr.bf16.mxu0 0
    %703 = vmatpush1.bf16.msra.mxu0 %v550
    %704 = vmatprep.subr.bf16.mxu0 0
    %705 = vmatpush1.bf16.msra.mxu0 %v551
    %706 = vmatprep.subr.bf16.mxu0 0
    %707 = vmatpush1.bf16.msra.mxu0 %v552
    %708 = vmatprep.subr.bf16.mxu0 0
    %709 = vmatpush1.bf16.msra.mxu0 %v553
    %710 = vmatprep.subr.bf16.mxu0 0
    %711 = vmatpush1.bf16.msra.mxu0 %v554
    %712 = vmatprep.subr.bf16.mxu0 0
    %713 = vmatpush1.bf16.msra.mxu0 %v555
    %714 = vmatprep.subr.bf16.mxu0 0
    %715 = vmatpush1.bf16.msra.mxu0 %v556
    %716 = vmatprep.subr.bf16.mxu0 0
    %717 = vmatpush1.bf16.msra.mxu0 %v557
    %718 = vmatprep.subr.bf16.mxu0 0
    %719 = vmatpush1.bf16.msra.mxu0 %v558
    %720 = vmatprep.subr.bf16.mxu0 0
    %721 = vmatpush1.bf16.msra.mxu0 %v559
    %722 = vmatprep.subr.bf16.mxu0 0
    %723 = vmatpush1.bf16.msra.mxu0 %v560
    %724 = vmatprep.subr.bf16.mxu0 0
    %725 = vmatpush1.bf16.msra.mxu0 %v561
    %726 = vmatprep.subr.bf16.mxu0 0
    %727 = vmatpush1.bf16.msra.mxu0 %v562
    %728 = vmatprep.subr.bf16.mxu0 0
    %729 = vmatpush1.bf16.msra.mxu0 %v563
    %730 = vmatprep.subr.bf16.mxu0 0
    %731 = vmatpush1.bf16.msra.mxu0 %v564
    %732 = vmatprep.subr.bf16.mxu0 0
    %733 = vmatpush1.bf16.msra.mxu0 %v565
    %734 = vmatprep.mubr.bf16.mxu0 %v222
    %735 = vmatmul.mubr.bf16.gmra.mrb[0].mxu0 %v221
    %v736 = vpop.f32.mrb[0].mxu0
    %v737 = vadd.f32 %v696, %v736
    %v738 = vpop.f32.mrb[0].mxu0
    %v739 = vpop.f32.mrb[0].mxu0
    %v740 = vadd.f32 %v699, %v739
    %v741 = vpop.f32.mrb[0].mxu0
    %742 = vdwg.mxu0
    %743 = vmatprep.subr.bf16.mxu0 0
    %744 = vmatpush1.bf16.msra.mxu0 %v566
    %745 = vmatprep.subr.bf16.mxu0 0
    %746 = vmatpush1.bf16.msra.mxu0 0
    %747 = vmatprep.subr.bf16.mxu0 0
    %748 = vmatpush1.bf16.msra.mxu0 0
    %749 = vmatprep.subr.bf16.mxu0 0
    %750 = vmatpush1.bf16.msra.mxu0 0
    %751 = vmatprep.subr.bf16.mxu0 0
    %752 = vmatpush1.bf16.msra.mxu0 0
    %753 = vmatprep.subr.bf16.mxu0 0
    %754 = vmatpush1.bf16.msra.mxu0 0
    %755 = vmatprep.subr.bf16.mxu0 0
    %756 = vmatpush1.bf16.msra.mxu0 0
    %757 = vmatprep.subr.bf16.mxu0 0
    %758 = vmatpush1.bf16.msra.mxu0 0
    %759 = vmatprep.subr.bf16.mxu0 0
    %760 = vmatpush1.bf16.msra.mxu0 0
    %761 = vmatprep.subr.bf16.mxu0 0
    %762 = vmatpush1.bf16.msra.mxu0 0
    %763 = vmatprep.subr.bf16.mxu0 0
    %764 = vmatpush1.bf16.msra.mxu0 0
    %765 = vmatprep.subr.bf16.mxu0 0
    %766 = vmatpush1.bf16.msra.mxu0 0
    %767 = vmatprep.subr.bf16.mxu0 0
    %768 = vmatpush1.bf16.msra.mxu0 0
    %769 = vmatprep.subr.bf16.mxu0 0
    %770 = vmatpush1.bf16.msra.mxu0 0
    %771 = vmatprep.subr.bf16.mxu0 0
    %772 = vmatpush1.bf16.msra.mxu0 0
    %773 = vmatprep.subr.bf16.mxu0 0
    %774 = vmatpush1.bf16.msra.mxu0 0
    %775 = vmatprep.mubr.bf16.mxu0 0
    %776 = vmatmul.mubr.bf16.gmra.mrb[0].mxu0 %v618
    %v777 = vpop.f32.mrb[0].mxu0
    %v778 = vadd.f32 %v737, %v777
    %v779 = vpop.f32.mrb[0].mxu0
    %v780 = vpop.f32.mrb[0].mxu0
    %v781 = vadd.f32 %v740, %v780
    %v782 = vpop.f32.mrb[0].mxu0
    %783 = vdwg.mxu0
    %v784 = vmax.f32 %v778, 0.0
    %v785 = vmax.f32 %v781, 0.0
    %v786 = vpack.c.bf16 %v785, %v784
    %v787 = vld [vmem:[%s2] sm:$0xf]
    %v788 = vld [vmem:[%s2 + $0x4] sm:$0xf]
    %v789 = vld [vmem:[%s2 + $0x8] sm:$0xf]
    %v790 = vld [vmem:[%s2 + $0xc] sm:$0xf]
    %v791 = vld [vmem:[%s2 + $0x10] sm:$0xf]
    %v792 = vld [vmem:[%s2 + $0x14] sm:$0xf]
    %v793 = vld [vmem:[%s2 + $0x18] sm:$0xf]
    %v794 = vld [vmem:[%s2 + $0x1c] sm:$0xf]
    %v795 = vld [vmem:[%s2 + $0x20] sm:$0xf]
    %v796 = vld [vmem:[%s2 + $0x24] sm:$0xf]
    %v797 = vld [vmem:[%s2 + $0x28] sm:$0xf]
    %v798 = vld [vmem:[%s2 + $0x2c] sm:$0xf]
    %v799 = vld [vmem:[%s2 + $0x30] sm:$0xf]
    %v800 = vld [vmem:[%s2 + $0x34] sm:$0xf]
    %v801 = vld [vmem:[%s2 + $0x38] sm:$0xf]
    %v802 = vld [vmem:[%s2 + $0x3c] sm:$0xf]
    %v819 = vunpack.c.l.b16 %v787
    %v820 = vunpack.c.l.b16 %v788
    %v821 = vunpack.c.l.b16 %v789
    %v822 = vunpack.c.l.b16 %v790
    %v823 = vunpack.c.l.b16 %v791
    %v824 = vunpack.c.l.b16 %v792
    %v825 = vunpack.c.l.b16 %v793
    %v826 = vunpack.c.l.b16 %v794
    %v827 = vunpack.c.l.b16 %v795
    %v828 = vunpack.c.l.b16 %v796
    %v829 = vunpack.c.l.b16 %v797
    %v830 = vunpack.c.l.b16 %v798
    %v831 = vunpack.c.l.b16 %v799
    %v832 = vunpack.c.l.b16 %v800
    %v833 = vunpack.c.l.b16 %v801
    %v834 = vunpack.c.l.b16 %v802
    %v835 = vpack.c.b16 %v820, %v819
    %v836 = vpack.c.b16 %v822, %v821
    %v837 = vpack.c.b16 %v824, %v823
    %v838 = vpack.c.b16 %v826, %v825
    %v839 = vpack.c.b16 %v828, %v827
    %v840 = vpack.c.b16 %v830, %v829
    %v841 = vpack.c.b16 %v832, %v831
    %v842 = vpack.c.b16 %v834, %v833
    %851 = vmatprep.subr.bf16.mxu0 0
    %852 = vmatpush1.bf16.msra.mxu0 %v835
    %853 = vmatprep.subr.bf16.mxu0 0
    %854 = vmatpush1.bf16.msra.mxu0 %v836
    %855 = vmatprep.subr.bf16.mxu0 0
    %856 = vmatpush1.bf16.msra.mxu0 %v837
    %857 = vmatprep.subr.bf16.mxu0 0
    %858 = vmatpush1.bf16.msra.mxu0 %v838
    %859 = vmatprep.subr.bf16.mxu0 0
    %860 = vmatpush1.bf16.msra.mxu0 %v839
    %861 = vmatprep.subr.bf16.mxu0 0
    %862 = vmatpush1.bf16.msra.mxu0 %v840
    %863 = vmatprep.subr.bf16.mxu0 0
    %864 = vmatpush1.bf16.msra.mxu0 %v841
    %865 = vmatprep.subr.bf16.mxu0 0
    %866 = vmatpush1.bf16.msra.mxu0 %v842
    %867 = vmatprep.subr.bf16.mxu0 0
    %868 = vmatpush1.bf16.msra.mxu0 0
    %869 = vmatprep.subr.bf16.mxu0 0
    %870 = vmatpush1.bf16.msra.mxu0 0
    %871 = vmatprep.subr.bf16.mxu0 0
    %872 = vmatpush1.bf16.msra.mxu0 0
    %873 = vmatprep.subr.bf16.mxu0 0
    %874 = vmatpush1.bf16.msra.mxu0 0
    %875 = vmatprep.subr.bf16.mxu0 0
    %876 = vmatpush1.bf16.msra.mxu0 0
    %877 = vmatprep.subr.bf16.mxu0 0
    %878 = vmatpush1.bf16.msra.mxu0 0
    %879 = vmatprep.subr.bf16.mxu0 0
    %880 = vmatpush1.bf16.msra.mxu0 0
    %881 = vmatprep.subr.bf16.mxu0 0
    %882 = vmatpush1.bf16.msra.mxu0 0
    %883 = vmatprep.mubr.bf16.mxu0 0
    %884 = vmatmul.mubr.bf16.gmra.mrb[0].mxu0 %v786
    %v885 = vpop.f32.mrb[0].mxu0
    %v886 = vadd.f32 0.0, %v885
    %v887 = vpop.f32.mrb[0].mxu0
    %v888 = vpop.f32.mrb[0].mxu0
    %v889 = vadd.f32 0.0, %v888
    %v890 = vpop.f32.mrb[0].mxu0
    %891 = vdwg.mxu0
    %v892 = vpack.c.bf16 %v889, %v886
    %v894 = vcombine.high %v892, %v892
    %v896 = vunpack.c.l.s4 1966171168
    %v897 = vunpack.c.0.s8 %v896
    %v898 = vlaneseq
    %v899 = vshrl.u32 %v898, 7
    %v900 = vsub.s32 %v897, %v899
    %v901 = vrot.slane %v892, %v900
    %v903 = vunpack.c.l.s4 1966171168
    %v904 = vunpack.c.0.s8 %v903
    %v905 = vlaneseq
    %v906 = vshrl.u32 %v905, 7
    %v907 = vsub.s32 %v904, %v906
    %v908 = vrot.slane %v894, %v907
    %v909 = vcombine.high %v901, %v901
    %v910 = vcombine.high %v908, %v908
    %v912 = vunpack.c.l.s4 1966171168
    %v913 = vunpack.c.0.s8 %v912
    %v914 = vlaneseq
    %v915 = vshrl.u32 %v914, 7
    %v916 = vsub.s32 %v913, %v915
    %v917 = vrot.slane %v901, %v916
    %v919 = vunpack.c.l.s4 1966171168
    %v920 = vunpack.c.0.s8 %v919
    %v921 = vlaneseq
    %v922 = vshrl.u32 %v921, 7
    %v923 = vsub.s32 %v920, %v922
    %v924 = vrot.slane %v908, %v923
    %v926 = vunpack.c.l.s4 1966171168
    %v927 = vunpack.c.0.s8 %v926
    %v928 = vlaneseq
    %v929 = vshrl.u32 %v928, 7
    %v930 = vsub.s32 %v927, %v929
    %v931 = vrot.slane %v909, %v930
    %v933 = vunpack.c.l.s4 1966171168
    %v934 = vunpack.c.0.s8 %v933
    %v935 = vlaneseq
    %v936 = vshrl.u32 %v935, 7
    %v937 = vsub.s32 %v934, %v936
    %v938 = vrot.slane %v910, %v937
    %v939 = vcombine.high %v917, %v917
    %v940 = vcombine.high %v924, %v924
    %v941 = vcombine.high %v931, %v931
    %v942 = vcombine.high %v938, %v938
    %951 = vst [vmem:[#allocation4] sm:$0x1] %v917
    %952 = vst [vmem:[#allocation4 + $0x1] sm:$0x1] %v931
    %953 = vst [vmem:[#allocation4 + $0x2] sm:$0x1] %v939
    %954 = vst [vmem:[#allocation4 + $0x3] sm:$0x1] %v941
    %955 = vst [vmem:[#allocation4 + $0x4] sm:$0x1] %v924
    %956 = vst [vmem:[#allocation4 + $0x5] sm:$0x1] %v938
    %957 = vst [vmem:[#allocation4 + $0x6] sm:$0x1] %v940
    %958 = vst [vmem:[#allocation4 + $0x7] sm:$0x1] %v942
    // Predicated region
    $region18: #{simple_linear_forward.1} parent=1 // pred_check
      _
    $region19: #{simple_linear_forward.1} parent=1 // pred_check_branch
      %960 = sbr.rel (0) target = $region21
    $region20: #{simple_linear_forward.1} parent=1 // pred_region
      // Predicated region
      $region22: #{simple_linear_forward.1} parent=20 // pred_check
        _
      $region23: #{simple_linear_forward.1} parent=20 // pred_check_branch
        %962 = sbr.rel (0) target = $region25
      $region24: #{simple_linear_forward.1} parent=20 // pred_region
        // Predicated region
        $region26: #{simple_linear_forward.1} parent=24 // pred_check
          _
        $region27: #{simple_linear_forward.1} parent=24 // pred_check_branch
          %964 = sbr.rel target = $region29
        $region28: #{simple_linear_forward.1} parent=24 // pred_region
          // Predicated region
          $region41: #{simple_linear_forward.1} parent=28 // pred_check
            _
          $region42: #{simple_linear_forward.1} parent=28 // pred_check_branch
            %979 = sbr.rel (0) target = $region44
          $region43: #{simple_linear_forward.1} parent=28 // pred_region
            loop: start=0, step=1, limit=1
            $region45: #{simple_linear_forward.1} parent=43 // loop_pre_header
              _
            $region46: #{simple_linear_forward.1} parent=43 // loop_header
              %s982 = sphi 0, %s986
              %p983 = scmp.ge.s32.totalorder %s982, 1
              %s987 = sphi [#allocation4], [#allocation4]
              %s988 = sphi %s3, %s3
            $region47: #{simple_linear_forward.1} parent=43 // loop_header_branch
              %985 = sbr.rel (%p983) target = $region51
            $region48: #{simple_linear_forward.1} parent=43 // loop_body
              %v989 = vld [vmem:[%s987] sm:$0x1]
              %990 = vst [vmem:[%s988] sm:$0x1] %v989
            $region49: #{simple_linear_forward.1} parent=43 // loop_footer
              %s986 = sadd.s32 1, %s982
            $region50: #{simple_linear_forward.1} parent=43 // loop_footer_branch
              %981 = sbr.rel target = $region46
            $region51: #{simple_linear_forward.1} parent=43 // loop_exit
              _
          $region44: #{simple_linear_forward.1} parent=28 // pred_fallthru
            _
        $region29: #{simple_linear_forward.1} parent=24 // pred_fallthru
          _
        // Predicated region
        $region30: #{simple_linear_forward.1} parent=24 // pred_check
          _
        $region31: #{simple_linear_forward.1} parent=24 // pred_check_branch
          %966 = sbr.rel (0) target = $region33
        $region32: #{simple_linear_forward.1} parent=24 // pred_region
          loop: start=0, step=1, limit=1
          $region34: #{simple_linear_forward.1} parent=32 // loop_pre_header
            _
          $region35: #{simple_linear_forward.1} parent=32 // loop_header
            %s969 = sphi 0, %s973
            %p970 = scmp.ge.s32.totalorder %s969, 1
            %s974 = sphi [#allocation4], [#allocation4]
            %s975 = sphi %s3, %s3
          $region36: #{simple_linear_forward.1} parent=32 // loop_header_branch
            %972 = sbr.rel (%p970) target = $region40
          $region37: #{simple_linear_forward.1} parent=32 // loop_body
            %v976 = vld [vmem:[%s974] sm:$0x1]
            %977 = vst [vmem:[%s975] sm:$0x1] %v976
          $region38: #{simple_linear_forward.1} parent=32 // loop_footer
            %s973 = sadd.s32 1, %s969
          $region39: #{simple_linear_forward.1} parent=32 // loop_footer_branch
            %968 = sbr.rel target = $region35
          $region40: #{simple_linear_forward.1} parent=32 // loop_exit
            _
        $region33: #{simple_linear_forward.1} parent=24 // pred_fallthru
          _
      $region25: #{simple_linear_forward.1} parent=20 // pred_fallthru
        _
      %991 = vnop
    $region21: #{simple_linear_forward.1} parent=1 // pred_fallthru
      _
    // Predicated region
    $region52: #{simple_linear_forward.1} parent=1 // pred_check
      _
    $region53: #{simple_linear_forward.1} parent=1 // pred_check_branch
      %993 = sbr.rel (0) target = $region55
    $region54: #{simple_linear_forward.1} parent=1 // pred_region
      _
    $region55: #{simple_linear_forward.1} parent=1 // pred_fallthru
      _
    %994 = vsyncpa [#allocation3], 1

</llo_original>
